<compile_context>
chip_gen: v7x
topology: tpu7x:2x2x1
jax: 0.10.0
libtpu: 0.0.40
codegen_flags: <defaults>
</compile_context>

<pallas_src>
import functools

import numpy as np
import jax
import jax.numpy as jnp
from jax import lax
from jax.experimental import pallas as pl
from jax.experimental.pallas import tpu as pltpu


POOL_BLK = 128   # lane-aligned width of each pool-offset output block
TB_MAX = 2048    # max batch-tile rows per grid step


# ----------------------------------------------------------------------------
# Pallas kernel: whole DQN forward on one (TB, :) batch tile.
# ----------------------------------------------------------------------------
def dqn_kernel(x_ref, m1_ref, b1_ref, m2_ref, b2_ref, m3_ref, b3_ref,
               m4_ref, b4_ref, wl_ref, bl_ref, out_ref):
    f32 = jnp.float32
    x = x_ref[...]                                                # (TB, Ci*16)

    # conv1 (3x3 "same", folded to one dense matmul) + ReLU       -> (TB, 160)
    h = jnp.dot(x, m1_ref[...], preferred_element_type=f32) + b1_ref[...]
    h = jnp.maximum(h, 0.0)

    # conv2 + ReLU + maxpool2x2, fused: ONE matmul against the 4-offset
    # concatenated RHS (each offset block 128-lane aligned, zero padded), then
    # a 3-op VPU max over the 128-wide lane slices.
    # maxpool(relu(conv+b)) == relu(max_k conv_k + b).
    y = jnp.dot(h, m2_ref[...], preferred_element_type=f32)      # (TB, 512)
    z = jnp.maximum(jnp.maximum(y[:, 0:128], y[:, 128:256]),
                    jnp.maximum(y[:, 256:384], y[:, 384:512]))   # (TB, 128)
    h = jnp.maximum(z + b2_ref[...], 0.0)    # cols 40..127 are exactly 0

    # conv3 (3x3 "same" on the 2x2 grid, folded; K zero-padded to 128) + ReLU
    h = jnp.dot(h, m3_ref[...], preferred_element_type=f32) + b3_ref[...]
    h = jnp.maximum(h, 0.0)                                       # (TB, 40)

    # conv4 + ReLU + maxpool2x2, fused (same single-matmul trick)
    y = jnp.dot(h, m4_ref[...], preferred_element_type=f32)      # (TB, 512)
    z = jnp.maximum(jnp.maximum(y[:, 0:128], y[:, 128:256]),
                    jnp.maximum(y[:, 256:384], y[:, 384:512]))   # (TB, 128)
    h = jnp.maximum(z + b4_ref[...], 0.0)    # cols 10..127 are exactly 0

    # final Linear (K zero-padded to 128); narrow (round_up(A,8)) output store.
    out_ref[...] = jnp.dot(h, wl_ref[...], preferred_element_type=f32) + bl_ref[...]


# ----------------------------------------------------------------------------
# One-time host-side weight folding (pure NumPy, run once per parameter set).
# Activation layout inside the kernel: (batch, C*H*W) with NCHW flatten order,
# i.e. column index = c*H*W + i*W + j.
# ----------------------------------------------------------------------------
def _fold_conv_full(w, H, W):
    """(Co, Ci, 3, 3) conv weight -> dense (Ci*H*W, Co*H*W) 'same' conv matrix."""
    Co, Ci = int(w.shape[0]), int(w.shape[1])
    HW = H * W
    M = np.zeros((Ci * HW, Co * HW), np.float32)
    for co in range(Co):
        for ci in range(Ci):
            for di in range(3):
                for dj in range(3):
                    wv = float(w[co, ci, di, dj])
                    if wv == 0.0:
                        continue
                    for i in range(H):
                        for j in range(W):
                            pi, pj = i + di - 1, j + dj - 1
                            if 0 <= pi < H and 0 <= pj < W:
                                M[ci * HW + pi * W + pj, co * HW + i * W + j] += wv
    return M


def _fold_conv_pool_concat(w, H, W, blk=POOL_BLK):
    """(Co, Ci, 3, 3) -> (Ci*H*W, 4*blk) fused conv+pool RHS.

    Offset k = ki*2 + kj occupies columns [k*blk, k*blk + Co*(H//2)*(W//2)) and
    holds the 'same' conv restricted to output positions (2*oi+ki, 2*oj+kj),
    i.e. the k-th candidate of each 2x2 max-pool window.  Remaining columns of
    each block are zero so the blocks are 128-lane aligned.
    """
    Co, Ci = int(w.shape[0]), int(w.shape[1])
    HW = H * W
    Ho, Wo = H // 2, W // 2
    HWo = Ho * Wo
    assert Co * HWo <= blk
    M = np.zeros((Ci * HW, 4 * blk), np.float32)
    for ki in range(2):
        for kj in range(2):
            k = ki * 2 + kj
            for co in range(Co):
                for ci in range(Ci):
                    for di in range(3):
                        for dj in range(3):
                            wv = float(w[co, ci, di, dj])
                            if wv == 0.0:
                                continue
                            for oi in range(Ho):
                                for oj in range(Wo):
                                    i, j = 2 * oi + ki, 2 * oj + kj
                                    pi, pj = i + di - 1, j + dj - 1
                                    if 0 <= pi < H and 0 <= pj < W:
                                        M[ci * HW + pi * W + pj,
                                          k * blk + co * HWo + oi * Wo + oj] += wv
    return M


def _round_up(x, m):
    return (x + m - 1) // m * m


def prepare_params(params):
    """Fold conv weights / biases / final linear once; returns jnp arrays."""
    A = int(params["wl"].shape[0])
    out_w = max(8, _round_up(A, 8))   # narrow, sublane-rounded output width

    m1 = _fold_conv_full(np.asarray(params["w1"]), 4, 4)           # (Ci*16, 160)
    m2 = _fold_conv_pool_concat(np.asarray(params["w2"]), 4, 4)    # (160, 512)

    m3_core = _fold_conv_full(np.asarray(params["w3"]), 2, 2)      # (40, 40)
    m3 = np.zeros((POOL_BLK, m3_core.shape[1]), np.float32)        # (128, 40)
    m3[:m3_core.shape[0], :] = m3_core

    m4 = _fold_conv_pool_concat(np.asarray(params["w4"]), 2, 2)    # (40, 512)

    b1 = np.repeat(np.asarray(params["b1"], np.float32), 16)[None, :]   # (1, 160)
    b2 = np.zeros((1, POOL_BLK), np.float32)                            # (1, 128)
    b2[0, :40] = np.repeat(np.asarray(params["b2"], np.float32), 4)
    b3 = np.repeat(np.asarray(params["b3"], np.float32), 4)[None, :]    # (1, 40)
    b4 = np.zeros((1, POOL_BLK), np.float32)                            # (1, 128)
    b4[0, :10] = np.asarray(params["b4"], np.float32)

    wl = np.zeros((POOL_BLK, out_w), np.float32)                        # (128, out_w)
    wl[:10, :A] = np.asarray(params["wl"], np.float32).T
    bl = np.zeros((1, out_w), np.float32)
    bl[0, :A] = np.asarray(params["bl"], np.float32)

    to_j = lambda a: jnp.asarray(a, jnp.float32)
    return {"m1": to_j(m1), "b1": to_j(b1), "m2": to_j(m2), "b2": to_j(b2),
            "m3": to_j(m3), "b3": to_j(b3), "m4": to_j(m4), "b4": to_j(b4),
            "wl": to_j(wl), "bl": to_j(bl)}


# ----------------------------------------------------------------------------
# Jitted wrapper: batch tiling grid + pallas_call.
# ----------------------------------------------------------------------------
@functools.partial(jax.jit, static_argnames=("out_actions",))
def dqn_forward_pallas(x_nchw, folded, out_actions):
    B, Ci, H, W = x_nchw.shape
    assert (H, W) == (4, 4), "Linear(10*1*1) implies a 4x4 spatial input"

    # NCHW flatten == channel-major (c*HW + i*W + j) layout used by folded mats.
    x2d = x_nchw.reshape(B, Ci * H * W).astype(jnp.float32)

    out_w = folded["wl"].shape[1]

    # Batch tile: multiple of 8 sublanes, up to TB_MAX rows.  When the batch is
    # big enough, pick the tile so the grid has >= 2 steps so the "parallel"
    # axis actually splits work across v7x's two TensorCores.
    Bp8 = _round_up(B, 8)
    if Bp8 <= 16:
        TB = Bp8
    else:
        TB = min(TB_MAX, _round_up((Bp8 + 1) // 2, 8))
    Bp = _round_up(B, TB)
    if Bp != B:
        x2d = jnp.pad(x2d, ((0, Bp - B), (0, 0)))

    consts = (folded["m1"], folded["b1"], folded["m2"], folded["b2"],
              folded["m3"], folded["b3"], folded["m4"], folded["b4"],
              folded["wl"], folded["bl"])

    # Constant index_map -> weights stay VMEM-resident (no re-DMA after step 0).
    # TODO(synk): single-buffer the constant inputs (pipeline_mode) once stable.
    out = pl.pallas_call(
        dqn_kernel,
        out_shape=jax.ShapeDtypeStruct((Bp, out_w), jnp.float32),
        grid=(Bp // TB,),
        in_specs=[pl.BlockSpec((TB, Ci * H * W), lambda i: (i, 0))]
                 + [pl.BlockSpec(c.shape, lambda i: (0, 0)) for c in consts],
        out_specs=pl.BlockSpec((TB, out_w), lambda i: (i, 0)),
        compiler_params=pltpu.CompilerParams(
            dimension_semantics=("parallel",)),   # 2 TCs on v7x; no-op v5e/v6e
    )(x2d, *consts)

    return out[:B, :out_actions]


# ----------------------------------------------------------------------------
# Independent pure-JAX reference (matches the PyTorch forward semantics).
# ----------------------------------------------------------------------------
def dqn_forward_ref(x, p):
    hi = lax.Precision.HIGHEST

    def conv(v, w, b):
        y = lax.conv_general_dilated(v, w, (1, 1), "SAME",
                                     dimension_numbers=("NCHW", "OIHW", "NCHW"),
                                     precision=hi)
        return y + b[None, :, None, None]

    def pool(v):
        return lax.reduce_window(v, -jnp.inf, lax.max, (1, 1, 2, 2), (1, 1, 2, 2), "VALID")

    relu = lambda v: jnp.maximum(v, 0.0)
    h = relu(conv(x, p["w1"], p["b1"]))
    h = relu(conv(h, p["w2"], p["b2"]))
    h = pool(h)
    h = relu(conv(h, p["w3"], p["b3"]))
    h = relu(conv(h, p["w4"], p["b4"]))
    h = pool(h)
    h = h.reshape(x.shape[0], -1)
    return jnp.dot(h, p["wl"].T, precision=hi) + p["bl"][None, :]


# ----------------------------------------------------------------------------
# Deterministic parameter init (PyTorch-style uniform(-1/sqrt(fan_in), +...)).
# ----------------------------------------------------------------------------
def init_params(key, c_in, out_actions):
    p = {}

    def uinit(k, shape, fan_in):
        bound = 1.0 / np.sqrt(fan_in)
        return jax.random.uniform(k, shape, jnp.float32, -bound, bound)

    keys = jax.random.split(key, 10)
    p["w1"] = uinit(keys[0], (10, c_in, 3, 3), c_in * 9)
    p["b1"] = uinit(keys[1], (10,), c_in * 9)
    p["w2"] = uinit(keys[2], (10, 10, 3, 3), 10 * 9)
    p["b2"] = uinit(keys[3], (10,), 10 * 9)
    p["w3"] = uinit(keys[4], (10, 10, 3, 3), 10 * 9)
    p["b3"] = uinit(keys[5], (10,), 10 * 9)
    p["w4"] = uinit(keys[6], (10, 10, 3, 3), 10 * 9)
    p["b4"] = uinit(keys[7], (10,), 10 * 9)
    p["wl"] = uinit(keys[8], (out_actions, 10), 10)
    p["bl"] = uinit(keys[9], (out_actions,), 10)
    return p


if __name__ == "__main__":
    C_IN = 3                       # 3-channel input; 4x4 spatial implied by Linear(10*1*1)
    HGT, WID = 4, 4
    OUT_ACTIONS = 4

    key = jax.random.PRNGKey(0)
    kx, kx2, kp = jax.random.split(key, 3)
    params = init_params(kp, C_IN, OUT_ACTIONS)
    folded = prepare_params(params)          # one-time host-side weight folding

    # Small-batch check (single grid step).
    B = 2
    x = jax.random.normal(kx, (B, C_IN, HGT, WID), jnp.float32)   # NCHW, like PyTorch
    out = jax.block_until_ready(dqn_forward_pallas(x, folded, OUT_ACTIONS))
    ref = jax.block_until_ready(dqn_forward_ref(x, params))
    assert out.shape == (B, OUT_ACTIONS)
    d1 = float(np.max(np.abs(np.asarray(out) - np.asarray(ref))))
    assert np.allclose(np.asarray(out), np.asarray(ref), atol=1e-4, rtol=1e-4), (
        f"small-batch mismatch: max abs diff {d1}")

    # Larger-batch check: exercises the multi-step grid and batch padding.
    B2 = 300
    x2 = jax.random.normal(kx2, (B2, C_IN, HGT, WID), jnp.float32)
    out2 = jax.block_until_ready(dqn_forward_pallas(x2, folded, OUT_ACTIONS))
    ref2 = jax.block_until_ready(dqn_forward_ref(x2, params))
    assert out2.shape == (B2, OUT_ACTIONS)
    d2 = float(np.max(np.abs(np.asarray(out2) - np.asarray(ref2))))
    assert np.allclose(np.asarray(out2), np.asarray(ref2), atol=1e-4, rtol=1e-4), (
        f"large-batch mismatch: max abs diff {d2}")

    print("KERNEL_OK")
</pallas_src>

<mosaic_0001>
module attributes {stable_mosaic.version = 11 : i64} {
  func.func @dqn_kernel(%arg0: i32, %arg1: memref<8x48xf32, #tpu.memory_space<vmem>>, %arg2: memref<48x160xf32, #tpu.memory_space<vmem>>, %arg3: memref<1x160xf32, #tpu.memory_space<vmem>>, %arg4: memref<160x512xf32, #tpu.memory_space<vmem>>, %arg5: memref<1x128xf32, #tpu.memory_space<vmem>>, %arg6: memref<128x40xf32, #tpu.memory_space<vmem>>, %arg7: memref<1x40xf32, #tpu.memory_space<vmem>>, %arg8: memref<40x512xf32, #tpu.memory_space<vmem>>, %arg9: memref<1x128xf32, #tpu.memory_space<vmem>>, %arg10: memref<128x8xf32, #tpu.memory_space<vmem>>, %arg11: memref<1x8xf32, #tpu.memory_space<vmem>>, %arg12: memref<8x8xf32, #tpu.memory_space<vmem>>) attributes {dimension_semantics = [#tpu.dimension_semantics<parallel>], iteration_bounds = array<i64: 1>, scalar_prefetch = 0 : i64, scratch_operands = 0 : i64, tpu.core_type = #tpu.core_type<tc>, window_params = [{transform_indices = @transform_0, window_bounds = array<i64: 8, 48>}, {pipeline_mode = #tpu.pipeline_mode<synchronous>, transform_indices = @transform_1, window_bounds = array<i64: 48, 160>}, {pipeline_mode = #tpu.pipeline_mode<synchronous>, transform_indices = @transform_2, window_bounds = array<i64: 1, 160>}, {pipeline_mode = #tpu.pipeline_mode<synchronous>, transform_indices = @transform_3, window_bounds = array<i64: 160, 512>}, {pipeline_mode = #tpu.pipeline_mode<synchronous>, transform_indices = @transform_4, window_bounds = array<i64: 1, 128>}, {pipeline_mode = #tpu.pipeline_mode<synchronous>, transform_indices = @transform_5, window_bounds = array<i64: 128, 40>}, {pipeline_mode = #tpu.pipeline_mode<synchronous>, transform_indices = @transform_6, window_bounds = array<i64: 1, 40>}, {pipeline_mode = #tpu.pipeline_mode<synchronous>, transform_indices = @transform_7, window_bounds = array<i64: 40, 512>}, {pipeline_mode = #tpu.pipeline_mode<synchronous>, transform_indices = @transform_8, window_bounds = array<i64: 1, 128>}, {pipeline_mode = #tpu.pipeline_mode<synchronous>, transform_indices = @transform_9, window_bounds = array<i64: 128, 8>}, {pipeline_mode = #tpu.pipeline_mode<synchronous>, transform_indices = @transform_10, window_bounds = array<i64: 1, 8>}, {transform_indices = @transform_11, window_bounds = array<i64: 8, 8>}]} {
    %c0 = arith.constant 0 : index
    %c0_0 = arith.constant 0 : index
    %0 = vector.load %arg1[%c0, %c0_0] : memref<8x48xf32, #tpu.memory_space<vmem>>, vector<8x48xf32>
    %c0_1 = arith.constant 0 : index
    %c0_2 = arith.constant 0 : index
    %1 = vector.load %arg2[%c0_1, %c0_2] : memref<48x160xf32, #tpu.memory_space<vmem>>, vector<48x160xf32>
    %cst = arith.constant dense<0.000000e+00> : vector<8x160xf32>
    %2 = tpu.matmul %0, %1, %cst {dimension_numbers = #tpu.dot_dimension_numbers<[1], [0], [0], [1], [0, 0, 1, 1], [], []>} : vector<8x48xf32>, vector<48x160xf32>, vector<8x160xf32> -> vector<8x160xf32>
    %c0_3 = arith.constant 0 : index
    %c0_4 = arith.constant 0 : index
    %3 = vector.load %arg3[%c0_3, %c0_4] : memref<1x160xf32, #tpu.memory_space<vmem>>, vector<1x160xf32>
    %4 = vector.broadcast %3 : vector<1x160xf32> to vector<8x160xf32>
    %5 = arith.addf %2, %4 : vector<8x160xf32>
    %cst_5 = arith.constant 0.000000e+00 : f32
    %6 = vector.broadcast %cst_5 : f32 to vector<8x160xf32>
    %7 = arith.maximumf %5, %6 : vector<8x160xf32>
    %c0_6 = arith.constant 0 : index
    %c0_7 = arith.constant 0 : index
    %8 = vector.load %arg4[%c0_6, %c0_7] : memref<160x512xf32, #tpu.memory_space<vmem>>, vector<160x512xf32>
    %cst_8 = arith.constant dense<0.000000e+00> : vector<8x512xf32>
    %9 = tpu.matmul %7, %8, %cst_8 {dimension_numbers = #tpu.dot_dimension_numbers<[1], [0], [0], [1], [0, 0, 1, 1], [], []>} : vector<8x160xf32>, vector<160x512xf32>, vector<8x512xf32> -> vector<8x512xf32>
    %10 = vector.extract_strided_slice %9 {offsets = [0, 0], sizes = [8, 128], strides = [1, 1]} : vector<8x512xf32> to vector<8x128xf32>
    %11 = vector.extract_strided_slice %9 {offsets = [0, 128], sizes = [8, 128], strides = [1, 1]} : vector<8x512xf32> to vector<8x128xf32>
    %12 = arith.maximumf %10, %11 : vector<8x128xf32>
    %13 = vector.extract_strided_slice %9 {offsets = [0, 256], sizes = [8, 128], strides = [1, 1]} : vector<8x512xf32> to vector<8x128xf32>
    %14 = vector.extract_strided_slice %9 {offsets = [0, 384], sizes = [8, 128], strides = [1, 1]} : vector<8x512xf32> to vector<8x128xf32>
    %15 = arith.maximumf %13, %14 : vector<8x128xf32>
    %16 = arith.maximumf %12, %15 : vector<8x128xf32>
    %c0_9 = arith.constant 0 : index
    %c0_10 = arith.constant 0 : index
    %17 = vector.load %arg5[%c0_9, %c0_10] : memref<1x128xf32, #tpu.memory_space<vmem>>, vector<1x128xf32>
    %18 = vector.broadcast %17 : vector<1x128xf32> to vector<8x128xf32>
    %19 = arith.addf %16, %18 : vector<8x128xf32>
    %cst_11 = arith.constant 0.000000e+00 : f32
    %20 = vector.broadcast %cst_11 : f32 to vector<8x128xf32>
    %21 = arith.maximumf %19, %20 : vector<8x128xf32>
    %c0_12 = arith.constant 0 : index
    %c0_13 = arith.constant 0 : index
    %22 = vector.load %arg6[%c0_12, %c0_13] : memref<128x40xf32, #tpu.memory_space<vmem>>, vector<128x40xf32>
    %cst_14 = arith.constant dense<0.000000e+00> : vector<8x40xf32>
    %23 = tpu.matmul %21, %22, %cst_14 {dimension_numbers = #tpu.dot_dimension_numbers<[1], [0], [0], [1], [0, 0, 1, 1], [], []>} : vector<8x128xf32>, vector<128x40xf32>, vector<8x40xf32> -> vector<8x40xf32>
    %c0_15 = arith.constant 0 : index
    %c0_16 = arith.constant 0 : index
    %24 = vector.load %arg7[%c0_15, %c0_16] : memref<1x40xf32, #tpu.memory_space<vmem>>, vector<1x40xf32>
    %25 = vector.broadcast %24 : vector<1x40xf32> to vector<8x40xf32>
    %26 = arith.addf %23, %25 : vector<8x40xf32>
    %cst_17 = arith.constant 0.000000e+00 : f32
    %27 = vector.broadcast %cst_17 : f32 to vector<8x40xf32>
    %28 = arith.maximumf %26, %27 : vector<8x40xf32>
    %c0_18 = arith.constant 0 : index
    %c0_19 = arith.constant 0 : index
    %29 = vector.load %arg8[%c0_18, %c0_19] : memref<40x512xf32, #tpu.memory_space<vmem>>, vector<40x512xf32>
    %cst_20 = arith.constant dense<0.000000e+00> : vector<8x512xf32>
    %30 = tpu.matmul %28, %29, %cst_20 {dimension_numbers = #tpu.dot_dimension_numbers<[1], [0], [0], [1], [0, 0, 1, 1], [], []>} : vector<8x40xf32>, vector<40x512xf32>, vector<8x512xf32> -> vector<8x512xf32>
    %31 = vector.extract_strided_slice %30 {offsets = [0, 0], sizes = [8, 128], strides = [1, 1]} : vector<8x512xf32> to vector<8x128xf32>
    %32 = vector.extract_strided_slice %30 {offsets = [0, 128], sizes = [8, 128], strides = [1, 1]} : vector<8x512xf32> to vector<8x128xf32>
    %33 = arith.maximumf %31, %32 : vector<8x128xf32>
    %34 = vector.extract_strided_slice %30 {offsets = [0, 256], sizes = [8, 128], strides = [1, 1]} : vector<8x512xf32> to vector<8x128xf32>
    %35 = vector.extract_strided_slice %30 {offsets = [0, 384], sizes = [8, 128], strides = [1, 1]} : vector<8x512xf32> to vector<8x128xf32>
    %36 = arith.maximumf %34, %35 : vector<8x128xf32>
    %37 = arith.maximumf %33, %36 : vector<8x128xf32>
    %c0_21 = arith.constant 0 : index
    %c0_22 = arith.constant 0 : index
    %38 = vector.load %arg9[%c0_21, %c0_22] : memref<1x128xf32, #tpu.memory_space<vmem>>, vector<1x128xf32>
    %39 = vector.broadcast %38 : vector<1x128xf32> to vector<8x128xf32>
    %40 = arith.addf %37, %39 : vector<8x128xf32>
    %cst_23 = arith.constant 0.000000e+00 : f32
    %41 = vector.broadcast %cst_23 : f32 to vector<8x128xf32>
    %42 = arith.maximumf %40, %41 : vector<8x128xf32>
    %c0_24 = arith.constant 0 : index
    %c0_25 = arith.constant 0 : index
    %43 = vector.load %arg10[%c0_24, %c0_25] : memref<128x8xf32, #tpu.memory_space<vmem>>, vector<128x8xf32>
    %cst_26 = arith.constant dense<0.000000e+00> : vector<8x8xf32>
    %44 = tpu.matmul %42, %43, %cst_26 {dimension_numbers = #tpu.dot_dimension_numbers<[1], [0], [0], [1], [0, 0, 1, 1], [], []>} : vector<8x128xf32>, vector<128x8xf32>, vector<8x8xf32> -> vector<8x8xf32>
    %c0_27 = arith.constant 0 : index
    %c0_28 = arith.constant 0 : index
    %45 = vector.load %arg11[%c0_27, %c0_28] : memref<1x8xf32, #tpu.memory_space<vmem>>, vector<1x8xf32>
    %46 = vector.broadcast %45 : vector<1x8xf32> to vector<8x8xf32>
    %47 = arith.addf %44, %46 : vector<8x8xf32>
    %c0_29 = arith.constant 0 : index
    %c0_30 = arith.constant 0 : index
    %48 = vector.load %arg12[%c0_29, %c0_30] : memref<8x8xf32, #tpu.memory_space<vmem>>, vector<8x8xf32>
    tpu.vector_store %arg12[%c0_29, %c0_30], %47 {strides = array<i32>} : memref<8x8xf32, #tpu.memory_space<vmem>>, vector<8x8xf32>,
    return
  }
  func.func @transform_0(%arg0: i32) -> (i32, i32) {
    %c0_i32 = arith.constant 0 : i32
    %c0_i32_0 = arith.constant 0 : i32
    return %arg0, %c0_i32 : i32, i32
  }
  func.func @transform_1(%arg0: i32) -> (i32, i32) {
    %c0_i32 = arith.constant 0 : i32
    %c0_i32_0 = arith.constant 0 : i32
    %c0_i32_1 = arith.constant 0 : i32
    return %c0_i32, %c0_i32_0 : i32, i32
  }
  func.func @transform_2(%arg0: i32) -> (i32, i32) {
    %c0_i32 = arith.constant 0 : i32
    %c0_i32_0 = arith.constant 0 : i32
    %c0_i32_1 = arith.constant 0 : i32
    return %c0_i32, %c0_i32_0 : i32, i32
  }
  func.func @transform_3(%arg0: i32) -> (i32, i32) {
    %c0_i32 = arith.constant 0 : i32
    %c0_i32_0 = arith.constant 0 : i32
    %c0_i32_1 = arith.constant 0 : i32
    return %c0_i32, %c0_i32_0 : i32, i32
  }
  func.func @transform_4(%arg0: i32) -> (i32, i32) {
    %c0_i32 = arith.constant 0 : i32
    %c0_i32_0 = arith.constant 0 : i32
    %c0_i32_1 = arith.constant 0 : i32
    return %c0_i32, %c0_i32_0 : i32, i32
  }
  func.func @transform_5(%arg0: i32) -> (i32, i32) {
    %c0_i32 = arith.constant 0 : i32
    %c0_i32_0 = arith.constant 0 : i32
    %c0_i32_1 = arith.constant 0 : i32
    return %c0_i32, %c0_i32_0 : i32, i32
  }
  func.func @transform_6(%arg0: i32) -> (i32, i32) {
    %c0_i32 = arith.constant 0 : i32
    %c0_i32_0 = arith.constant 0 : i32
    %c0_i32_1 = arith.constant 0 : i32
    return %c0_i32, %c0_i32_0 : i32, i32
  }
  func.func @transform_7(%arg0: i32) -> (i32, i32) {
    %c0_i32 = arith.constant 0 : i32
    %c0_i32_0 = arith.constant 0 : i32
    %c0_i32_1 = arith.constant 0 : i32
    return %c0_i32, %c0_i32_0 : i32, i32
  }
  func.func @transform_8(%arg0: i32) -> (i32, i32) {
    %c0_i32 = arith.constant 0 : i32
    %c0_i32_0 = arith.constant 0 : i32
    %c0_i32_1 = arith.constant 0 : i32
    return %c0_i32, %c0_i32_0 : i32, i32
  }
  func.func @transform_9(%arg0: i32) -> (i32, i32) {
    %c0_i32 = arith.constant 0 : i32
    %c0_i32_0 = arith.constant 0 : i32
    %c0_i32_1 = arith.constant 0 : i32
    return %c0_i32, %c0_i32_0 : i32, i32
  }
  func.func @transform_10(%arg0: i32) -> (i32, i32) {
    %c0_i32 = arith.constant 0 : i32
    %c0_i32_0 = arith.constant 0 : i32
    %c0_i32_1 = arith.constant 0 : i32
    return %c0_i32, %c0_i32_0 : i32, i32
  }
  func.func @transform_11(%arg0: i32) -> (i32, i32) {
    %c0_i32 = arith.constant 0 : i32
    %c0_i32_0 = arith.constant 0 : i32
    return %arg0, %c0_i32 : i32, i32
  }
}

</mosaic_0001>

<llo_original>
// kernel: dqn_forward_pallas.1
$region0: #{dqn_forward_pallas.1}
  #allocation0 [shape = 'u32[]', space=smem, size = 0x4, offset = 0x4, fixed_abs, tag = 'smem constant byte address 0x4 - core index']
  #allocation1 [shape = 'u32[144,128]{1,0:T(1,128)}', space=vmem, size = 0x12000, scoped, tag = 'internal scratch']
  %s0 = inlined_call_operand.vmem [shape: f32[8,48], index: 0, kind: input, shape index: {}]
  %s1 = inlined_call_operand.vmem [shape: f32[48,160], index: 1, kind: input, shape index: {}]
  %s2 = inlined_call_operand.vmem [shape: f32[1,160], index: 2, kind: input, shape index: {}]
  %s3 = inlined_call_operand.hbm [shape: f32[160,512], index: 3, kind: input, shape index: {}]
  %s4 = inlined_call_operand.vmem [shape: f32[1,128], index: 4, kind: input, shape index: {}]
  %s5 = inlined_call_operand.vmem [shape: f32[128,40], index: 5, kind: input, shape index: {}]
  %s6 = inlined_call_operand.vmem [shape: f32[1,40], index: 6, kind: input, shape index: {}]
  %s7 = inlined_call_operand.vmem [shape: f32[40,512], index: 7, kind: input, shape index: {}]
  %s8 = inlined_call_operand.vmem [shape: f32[1,128], index: 8, kind: input, shape index: {}]
  %s9 = inlined_call_operand.vmem [shape: f32[128,8], index: 9, kind: input, shape index: {}]
  %s10 = inlined_call_operand.vmem [shape: f32[1,8], index: 10, kind: input, shape index: {}]
  %s11 = inlined_call_operand.vmem [shape: f32[8,8], index: 11, kind: output, shape index: {}]
  %s12 = sld [smem:[#allocation0]]
  $region58: #{dqn_forward_pallas.1} parent=0
    _
  %s14 = ssub.s32 1, %s12
  %s15 = scalar_select 0, %s14, %s12
  $region1: #{dqn_forward_pallas.1} parent=0
    #allocation2 [shape = 'u8[327680]{0}', space=vmem, size = 0x50000, scoped, tag = 'input window, operand 3, single buffered']
    #allocation3 [shape = 's32[1]{0}', space=sflag, size = 0x4, scoped, tag = 'scoped memory for dqn_forward_pallas.1']
    %16 = vsyncpa [#allocation3], 0
    // Predicated region
    $region2: #{dqn_forward_pallas.1} parent=1 // pred_check
      _
    $region3: #{dqn_forward_pallas.1} parent=1 // pred_check_branch
      %18 = sbr.rel (0) target = $region5
    $region4: #{dqn_forward_pallas.1} parent=1 // pred_region
      _
    $region5: #{dqn_forward_pallas.1} parent=1 // pred_fallthru
      _
    // Predicated region
    $region6: #{dqn_forward_pallas.1} parent=1 // pred_check
      _
    $region7: #{dqn_forward_pallas.1} parent=1 // pred_check_branch
      %20 = sbr.rel (0) target = $region9
    $region8: #{dqn_forward_pallas.1} parent=1 // pred_region
      _
    $region9: #{dqn_forward_pallas.1} parent=1 // pred_fallthru
      _
    // Predicated region
    $region10: #{dqn_forward_pallas.1} parent=1 // pred_check
      _
    $region11: #{dqn_forward_pallas.1} parent=1 // pred_check_branch
      %22 = sbr.rel (0) target = $region13
    $region12: #{dqn_forward_pallas.1} parent=1 // pred_region
      _
    $region13: #{dqn_forward_pallas.1} parent=1 // pred_fallthru
      _
    // Predicated region
    $region14: #{dqn_forward_pallas.1} parent=1 // pred_check
      _
    $region15: #{dqn_forward_pallas.1} parent=1 // pred_check_branch
      %24 = sbr.rel (0) target = $region17
    $region16: #{dqn_forward_pallas.1} parent=1 // pred_region
      %s26 = ssub.s32 10240, 10240
      %27 = vsyncadd [#allocation3], %s26
      %s28 = sshll.u32 [#allocation2], 4
      %s29 = int_to_ptr.vmem [resolvable:$true] %s28
      %34 = dma.hbm_to_vmem [thread:$0]  %s3, 10240, %s29, [#allocation3], 512, 512, 32
    $region17: #{dqn_forward_pallas.1} parent=1 // pred_fallthru
      _
    // Predicated region
    $region18: #{dqn_forward_pallas.1} parent=1 // pred_check
      _
    $region19: #{dqn_forward_pallas.1} parent=1 // pred_check_branch
      %36 = sbr.rel (0) target = $region21
    $region20: #{dqn_forward_pallas.1} parent=1 // pred_region
      _
    $region21: #{dqn_forward_pallas.1} parent=1 // pred_fallthru
      _
    // Predicated region
    $region22: #{dqn_forward_pallas.1} parent=1 // pred_check
      _
    $region23: #{dqn_forward_pallas.1} parent=1 // pred_check_branch
      %38 = sbr.rel (0) target = $region25
    $region24: #{dqn_forward_pallas.1} parent=1 // pred_region
      _
    $region25: #{dqn_forward_pallas.1} parent=1 // pred_fallthru
      _
    // Predicated region
    $region26: #{dqn_forward_pallas.1} parent=1 // pred_check
      _
    $region27: #{dqn_forward_pallas.1} parent=1 // pred_check_branch
      %40 = sbr.rel (0) target = $region29
    $region28: #{dqn_forward_pallas.1} parent=1 // pred_region
      _
    $region29: #{dqn_forward_pallas.1} parent=1 // pred_fallthru
      _
    // Predicated region
    $region30: #{dqn_forward_pallas.1} parent=1 // pred_check
      _
    $region31: #{dqn_forward_pallas.1} parent=1 // pred_check_branch
      %42 = sbr.rel (0) target = $region33
    $region32: #{dqn_forward_pallas.1} parent=1 // pred_region
      _
    $region33: #{dqn_forward_pallas.1} parent=1 // pred_fallthru
      _
    // Predicated region
    $region34: #{dqn_forward_pallas.1} parent=1 // pred_check
      _
    $region35: #{dqn_forward_pallas.1} parent=1 // pred_check_branch
      %44 = sbr.rel (0) target = $region37
    $region36: #{dqn_forward_pallas.1} parent=1 // pred_region
      _
    $region37: #{dqn_forward_pallas.1} parent=1 // pred_fallthru
      _
    // Predicated region
    $region38: #{dqn_forward_pallas.1} parent=1 // pred_check
      _
    $region39: #{dqn_forward_pallas.1} parent=1 // pred_check_branch
      %46 = sbr.rel (0) target = $region41
    $region40: #{dqn_forward_pallas.1} parent=1 // pred_region
      _
    $region41: #{dqn_forward_pallas.1} parent=1 // pred_fallthru
      _
    // Predicated region
    $region42: #{dqn_forward_pallas.1} parent=1 // pred_check
      _
    $region43: #{dqn_forward_pallas.1} parent=1 // pred_check_branch
      %48 = sbr.rel (0) target = $region45
    $region44: #{dqn_forward_pallas.1} parent=1 // pred_region
      _
    $region45: #{dqn_forward_pallas.1} parent=1 // pred_fallthru
      _
    // Predicated region
    $region46: #{dqn_forward_pallas.1} parent=1 // pred_check
      _
    $region47: #{dqn_forward_pallas.1} parent=1 // pred_check_branch
      %50 = sbr.rel (0) target = $region49
    $region48: #{dqn_forward_pallas.1} parent=1 // pred_region
      %51 = dma.done [#allocation3], 10240
    $region49: #{dqn_forward_pallas.1} parent=1 // pred_fallthru
      _
    %v52 = vld [vmem:[%s0] sm:$0xff]
    %v53 = vld [vmem:[%s1] sm:$0xff]
    %v54 = vld [vmem:[%s1 + $0x8] sm:$0xff]
    %v55 = vld [vmem:[%s1 + $0x10] sm:$0xff]
    %v56 = vld [vmem:[%s1 + $0x18] sm:$0xff]
    %v57 = vld [vmem:[%s1 + $0x20] sm:$0xff]
    %v58 = vld [vmem:[%s1 + $0x28] sm:$0xff]
    %v59 = vld [vmem:[%s1 + $0x30] sm:$0xff]
    %v60 = vld [vmem:[%s1 + $0x38] sm:$0xff]
    %v61 = vld [vmem:[%s1 + $0x40] sm:$0xff]
    %v62 = vld [vmem:[%s1 + $0x48] sm:$0xff]
    %v63 = vld [vmem:[%s1 + $0x50] sm:$0xff]
    %v64 = vld [vmem:[%s1 + $0x58] sm:$0xff]
    %v65 = vld [vmem:[%s2] sm:$0x3]
    %v67 = vlaneseq
    %v68 = vshrl.u32 %v67, 7
    %v69 = vsub.s32 0, %v68
    %v70 = vrot.slane %v65, %v69
    %v71 = vlaneseq
    %v72 = vshrl.u32 %v71, 7
    %v73 = vsub.s32 1, %v72
    %v74 = vrot.slane %v65, %v73
    %vm77 = vcmask 392192
    %v79 = vsel %vm77, %v52, 0
    %81 = vmatprep.subr.mxu0 %v54
    %82 = vmatpush1.msra.mxu0 %v53
    %83 = vmatprep.subr.mxu0 %v56
    %84 = vmatpush1.msra.mxu0 %v55
    %85 = vmatprep.subr.mxu0 %v58
    %86 = vmatpush1.msra.mxu0 %v57
    %87 = vmatprep.subr.mxu0 %v60
    %88 = vmatpush1.msra.mxu0 %v59
    %89 = vmatprep.subr.mxu0 %v62
    %90 = vmatpush1.msra.mxu0 %v61
    %91 = vmatprep.subr.mxu0 %v64
    %92 = vmatpush1.msra.mxu0 %v63
    %93 = vmatprep.subr.mxu0 0.0
    %94 = vmatpush1.msra.mxu0 0.0
    %95 = vmatprep.subr.mxu0 0.0
    %96 = vmatpush1.msra.mxu0 0.0
    %97 = vmatprep.subr.mxu0 0.0
    %98 = vmatpush1.msra.mxu0 0.0
    %99 = vmatprep.subr.mxu0 0.0
    %100 = vmatpush1.msra.mxu0 0.0
    %101 = vmatprep.subr.mxu0 0.0
    %102 = vmatpush1.msra.mxu0 0.0
    %103 = vmatprep.subr.mxu0 0.0
    %104 = vmatpush1.msra.mxu0 0.0
    %105 = vmatprep.subr.mxu0 0.0
    %106 = vmatpush1.msra.mxu0 0.0
    %107 = vmatprep.subr.mxu0 0.0
    %108 = vmatpush1.msra.mxu0 0.0
    %109 = vmatprep.subr.mxu0 0.0
    %110 = vmatpush1.msra.mxu0 0.0
    %111 = vmatprep.subr.mxu0 0.0
    %112 = vmatpush1.msra.mxu0 0.0
    %113 = vmatprep.subr.mxu0 0.0
    %114 = vmatpush1.msra.mxu0 0.0
    %115 = vmatprep.subr.mxu0 0.0
    %116 = vmatpush1.msra.mxu0 0.0
    %117 = vmatprep.subr.mxu0 0.0
    %118 = vmatpush1.msra.mxu0 0.0
    %119 = vmatprep.subr.mxu0 0.0
    %120 = vmatpush1.msra.mxu0 0.0
    %121 = vmatprep.subr.mxu0 0.0
    %122 = vmatpush1.msra.mxu0 0.0
    %123 = vmatprep.subr.mxu0 0.0
    %124 = vmatpush1.msra.mxu0 0.0
    %125 = vmatprep.subr.mxu0 0.0
    %126 = vmatpush1.msra.mxu0 0.0
    %127 = vmatprep.subr.mxu0 0.0
    %128 = vmatpush1.msra.mxu0 0.0
    %129 = vmatprep.subr.mxu0 0.0
    %130 = vmatpush1.msra.mxu0 0.0
    %131 = vmatprep.subr.mxu0 0.0
    %132 = vmatpush1.msra.mxu0 0.0
    %133 = vmatprep.subr.mxu0 0.0
    %134 = vmatpush1.msra.mxu0 0.0
    %135 = vmatprep.subr.mxu0 0.0
    %136 = vmatpush1.msra.mxu0 0.0
    %137 = vmatprep.subr.mxu0 0.0
    %138 = vmatpush1.msra.mxu0 0.0
    %139 = vmatprep.subr.mxu0 0.0
    %140 = vmatpush1.msra.mxu0 0.0
    %141 = vmatprep.subr.mxu0 0.0
    %142 = vmatpush1.msra.mxu0 0.0
    %143 = vmatprep.subr.mxu0 0.0
    %144 = vmatpush1.msra.mxu0 0.0
    %145 = vmatprep.mubr.f32.mxu0 0.0
    %146 = vmatmul.mubr.f32.gmra.mrb[0].mxu0 %v79
    %v147 = vpop.f32.mrb[0].mxu0
    %v148 = vadd.f32 %v70, %v147
    %v149 = vpop.f32.mrb[0].mxu0
    %v150 = vadd.f32 %v74, %v149
    %151 = vdwg.mxu0
    %v152 = vmax.f32 %v148, 0.0
    %v153 = vmax.f32 %v150, 0.0
    %v154 = vld [vmem:[#allocation2] sm:$0xff]
    %v155 = vld [vmem:[#allocation2 + $0x8] sm:$0xff]
    %v156 = vld [vmem:[#allocation2 + $0x10] sm:$0xff]
    %v157 = vld [vmem:[#allocation2 + $0x18] sm:$0xff]
    %v158 = vld [vmem:[#allocation2 + $0x20] sm:$0xff]
    %v159 = vld [vmem:[#allocation2 + $0x28] sm:$0xff]
    %v160 = vld [vmem:[#allocation2 + $0x30] sm:$0xff]
    %v161 = vld [vmem:[#allocation2 + $0x38] sm:$0xff]
    %v162 = vld [vmem:[#allocation2 + $0x40] sm:$0xff]
    %v163 = vld [vmem:[#allocation2 + $0x48] sm:$0xff]
    %v164 = vld [vmem:[#allocation2 + $0x50] sm:$0xff]
    %v165 = vld [vmem:[#allocation2 + $0x58] sm:$0xff]
    %v166 = vld [vmem:[#allocation2 + $0x60] sm:$0xff]
    %v167 = vld [vmem:[#allocation2 + $0x68] sm:$0xff]
    %v168 = vld [vmem:[#allocation2 + $0x70] sm:$0xff]
    %v169 = vld [vmem:[#allocation2 + $0x78] sm:$0xff]
    %v170 = vld [vmem:[#allocation2 + $0x80] sm:$0xff]
    %v171 = vld [vmem:[#allocation2 + $0x88] sm:$0xff]
    %v172 = vld [vmem:[#allocation2 + $0x90] sm:$0xff]
    %v173 = vld [vmem:[#allocation2 + $0x98] sm:$0xff]
    %v174 = vld [vmem:[#allocation2 + $0xa0] sm:$0xff]
    %v175 = vld [vmem:[#allocation2 + $0xa8] sm:$0xff]
    %v176 = vld [vmem:[#allocation2 + $0xb0] sm:$0xff]
    %v177 = vld [vmem:[#allocation2 + $0xb8] sm:$0xff]
    %v178 = vld [vmem:[#allocation2 + $0xc0] sm:$0xff]
    %v179 = vld [vmem:[#allocation2 + $0xc8] sm:$0xff]
    %v180 = vld [vmem:[#allocation2 + $0xd0] sm:$0xff]
    %v181 = vld [vmem:[#allocation2 + $0xd8] sm:$0xff]
    %v182 = vld [vmem:[#allocation2 + $0xe0] sm:$0xff]
    %v183 = vld [vmem:[#allocation2 + $0xe8] sm:$0xff]
    %v184 = vld [vmem:[#allocation2 + $0xf0] sm:$0xff]
    %v185 = vld [vmem:[#allocation2 + $0xf8] sm:$0xff]
    %v186 = vld [vmem:[#allocation2 + $0x100] sm:$0xff]
    %v187 = vld [vmem:[#allocation2 + $0x108] sm:$0xff]
    %v188 = vld [vmem:[#allocation2 + $0x110] sm:$0xff]
    %v189 = vld [vmem:[#allocation2 + $0x118] sm:$0xff]
    %v190 = vld [vmem:[#allocation2 + $0x120] sm:$0xff]
    %v191 = vld [vmem:[#allocation2 + $0x128] sm:$0xff]
    %v192 = vld [vmem:[#allocation2 + $0x130] sm:$0xff]
    %v193 = vld [vmem:[#allocation2 + $0x138] sm:$0xff]
    %v194 = vld [vmem:[#allocation2 + $0x140] sm:$0xff]
    %v195 = vld [vmem:[#allocation2 + $0x148] sm:$0xff]
    %v196 = vld [vmem:[#allocation2 + $0x150] sm:$0xff]
    %v197 = vld [vmem:[#allocation2 + $0x158] sm:$0xff]
    %v198 = vld [vmem:[#allocation2 + $0x160] sm:$0xff]
    %v199 = vld [vmem:[#allocation2 + $0x168] sm:$0xff]
    %v200 = vld [vmem:[#allocation2 + $0x170] sm:$0xff]
    %v201 = vld [vmem:[#allocation2 + $0x178] sm:$0xff]
    %v202 = vld [vmem:[#allocation2 + $0x180] sm:$0xff]
    %v203 = vld [vmem:[#allocation2 + $0x188] sm:$0xff]
    %v204 = vld [vmem:[#allocation2 + $0x190] sm:$0xff]
    %v205 = vld [vmem:[#allocation2 + $0x198] sm:$0xff]
    %v206 = vld [vmem:[#allocation2 + $0x1a0] sm:$0xff]
    %v207 = vld [vmem:[#allocation2 + $0x1a8] sm:$0xff]
    %v208 = vld [vmem:[#allocation2 + $0x1b0] sm:$0xff]
    %v209 = vld [vmem:[#allocation2 + $0x1b8] sm:$0xff]
    %v210 = vld [vmem:[#allocation2 + $0x1c0] sm:$0xff]
    %v211 = vld [vmem:[#allocation2 + $0x1c8] sm:$0xff]
    %v212 = vld [vmem:[#allocation2 + $0x1d0] sm:$0xff]
    %v213 = vld [vmem:[#allocation2 + $0x1d8] sm:$0xff]
    %v214 = vld [vmem:[#allocation2 + $0x1e0] sm:$0xff]
    %v215 = vld [vmem:[#allocation2 + $0x1e8] sm:$0xff]
    %v216 = vld [vmem:[#allocation2 + $0x1f0] sm:$0xff]
    %v217 = vld [vmem:[#allocation2 + $0x1f8] sm:$0xff]
    %v218 = vld [vmem:[#allocation2 + $0x200] sm:$0xff]
    %v219 = vld [vmem:[#allocation2 + $0x208] sm:$0xff]
    %v220 = vld [vmem:[#allocation2 + $0x210] sm:$0xff]
    %v221 = vld [vmem:[#allocation2 + $0x218] sm:$0xff]
    %v222 = vld [vmem:[#allocation2 + $0x220] sm:$0xff]
    %v223 = vld [vmem:[#allocation2 + $0x228] sm:$0xff]
    %v224 = vld [vmem:[#allocation2 + $0x230] sm:$0xff]
    %v225 = vld [vmem:[#allocation2 + $0x238] sm:$0xff]
    %v226 = vld [vmem:[#allocation2 + $0x240] sm:$0xff]
    %v227 = vld [vmem:[#allocation2 + $0x248] sm:$0xff]
    %v228 = vld [vmem:[#allocation2 + $0x250] sm:$0xff]
    %v229 = vld [vmem:[#allocation2 + $0x258] sm:$0xff]
    %v230 = vld [vmem:[#allocation2 + $0x260] sm:$0xff]
    %v231 = vld [vmem:[#allocation2 + $0x268] sm:$0xff]
    %v232 = vld [vmem:[#allocation2 + $0x270] sm:$0xff]
    %v233 = vld [vmem:[#allocation2 + $0x278] sm:$0xff]
    %vm234 = vcmask 261120
    %v236 = vsel %vm234, %v153, 0
    %238 = vmatprep.subr.mxu0 %v155
    %239 = vmatpush1.msra.mxu0 %v154
    %240 = vmatprep.subr.mxu0 %v159
    %241 = vmatpush1.msra.mxu0 %v158
    %242 = vmatprep.subr.mxu0 %v163
    %243 = vmatpush1.msra.mxu0 %v162
    %244 = vmatprep.subr.mxu0 %v167
    %245 = vmatpush1.msra.mxu0 %v166
    %246 = vmatprep.subr.mxu0 %v171
    %247 = vmatpush1.msra.mxu0 %v170
    %248 = vmatprep.subr.mxu0 %v175
    %249 = vmatpush1.msra.mxu0 %v174
    %250 = vmatprep.subr.mxu0 %v179
    %251 = vmatpush1.msra.mxu0 %v178
    %252 = vmatprep.subr.mxu0 %v183
    %253 = vmatpush1.msra.mxu0 %v182
    %254 = vmatprep.subr.mxu0 %v187
    %255 = vmatpush1.msra.mxu0 %v186
    %256 = vmatprep.subr.mxu0 %v191
    %257 = vmatpush1.msra.mxu0 %v190
    %258 = vmatprep.subr.mxu0 %v195
    %259 = vmatpush1.msra.mxu0 %v194
    %260 = vmatprep.subr.mxu0 %v199
    %261 = vmatpush1.msra.mxu0 %v198
    %262 = vmatprep.subr.mxu0 %v203
    %263 = vmatpush1.msra.mxu0 %v202
    %264 = vmatprep.subr.mxu0 %v207
    %265 = vmatpush1.msra.mxu0 %v206
    %266 = vmatprep.subr.mxu0 %v211
    %267 = vmatpush1.msra.mxu0 %v210
    %268 = vmatprep.subr.mxu0 %v215
    %269 = vmatpush1.msra.mxu0 %v214
    %270 = vmatprep.subr.mxu0 %v219
    %271 = vmatpush1.msra.mxu0 %v218
    %272 = vmatprep.subr.mxu0 %v223
    %273 = vmatpush1.msra.mxu0 %v222
    %274 = vmatprep.subr.mxu0 %v227
    %275 = vmatpush1.msra.mxu0 %v226
    %276 = vmatprep.subr.mxu0 %v231
    %277 = vmatpush1.msra.mxu0 %v230
    %278 = vmatprep.subr.mxu0 0.0
    %279 = vmatpush1.msra.mxu0 0.0
    %280 = vmatprep.subr.mxu0 0.0
    %281 = vmatpush1.msra.mxu0 0.0
    %282 = vmatprep.subr.mxu0 0.0
    %283 = vmatpush1.msra.mxu0 0.0
    %284 = vmatprep.subr.mxu0 0.0
    %285 = vmatpush1.msra.mxu0 0.0
    %286 = vmatprep.subr.mxu0 0.0
    %287 = vmatpush1.msra.mxu0 0.0
    %288 = vmatprep.subr.mxu0 0.0
    %289 = vmatpush1.msra.mxu0 0.0
    %290 = vmatprep.subr.mxu0 0.0
    %291 = vmatpush1.msra.mxu0 0.0
    %292 = vmatprep.subr.mxu0 0.0
    %293 = vmatpush1.msra.mxu0 0.0
    %294 = vmatprep.subr.mxu0 0.0
    %295 = vmatpush1.msra.mxu0 0.0
    %296 = vmatprep.subr.mxu0 0.0
    %297 = vmatpush1.msra.mxu0 0.0
    %298 = vmatprep.subr.mxu0 0.0
    %299 = vmatpush1.msra.mxu0 0.0
    %300 = vmatprep.subr.mxu0 0.0
    %301 = vmatpush1.msra.mxu0 0.0
    %302 = vmatprep.mubr.f32.mxu0 %v236
    %303 = vmatmul.mubr.f32.gmra.mrb[0].mxu0 %v152
    %v304 = vpop.f32.mrb[0].mxu0
    %v305 = vadd.f32 0.0, %v304
    %v306 = vpop.f32.mrb[0].mxu0
    %v307 = vadd.f32 0.0, %v306
    %308 = vdwg.mxu0
    %309 = vmatprep.subr.mxu0 %v157
    %310 = vmatpush1.msra.mxu0 %v156
    %311 = vmatprep.subr.mxu0 %v161
    %312 = vmatpush1.msra.mxu0 %v160
    %313 = vmatprep.subr.mxu0 %v165
    %314 = vmatpush1.msra.mxu0 %v164
    %315 = vmatprep.subr.mxu0 %v169
    %316 = vmatpush1.msra.mxu0 %v168
    %317 = vmatprep.subr.mxu0 %v173
    %318 = vmatpush1.msra.mxu0 %v172
    %319 = vmatprep.subr.mxu0 %v177
    %320 = vmatpush1.msra.mxu0 %v176
    %321 = vmatprep.subr.mxu0 %v181
    %322 = vmatpush1.msra.mxu0 %v180
    %323 = vmatprep.subr.mxu0 %v185
    %324 = vmatpush1.msra.mxu0 %v184
    %325 = vmatprep.subr.mxu0 %v189
    %326 = vmatpush1.msra.mxu0 %v188
    %327 = vmatprep.subr.mxu0 %v193
    %328 = vmatpush1.msra.mxu0 %v192
    %329 = vmatprep.subr.mxu0 %v197
    %330 = vmatpush1.msra.mxu0 %v196
    %331 = vmatprep.subr.mxu0 %v201
    %332 = vmatpush1.msra.mxu0 %v200
    %333 = vmatprep.subr.mxu0 %v205
    %334 = vmatpush1.msra.mxu0 %v204
    %335 = vmatprep.subr.mxu0 %v209
    %336 = vmatpush1.msra.mxu0 %v208
    %337 = vmatprep.subr.mxu0 %v213
    %338 = vmatpush1.msra.mxu0 %v212
    %339 = vmatprep.subr.mxu0 %v217
    %340 = vmatpush1.msra.mxu0 %v216
    %341 = vmatprep.subr.mxu0 %v221
    %342 = vmatpush1.msra.mxu0 %v220
    %343 = vmatprep.subr.mxu0 %v225
    %344 = vmatpush1.msra.mxu0 %v224
    %345 = vmatprep.subr.mxu0 %v229
    %346 = vmatpush1.msra.mxu0 %v228
    %347 = vmatprep.subr.mxu0 %v233
    %348 = vmatpush1.msra.mxu0 %v232
    %349 = vmatprep.subr.mxu0 0.0
    %350 = vmatpush1.msra.mxu0 0.0
    %351 = vmatprep.subr.mxu0 0.0
    %352 = vmatpush1.msra.mxu0 0.0
    %353 = vmatprep.subr.mxu0 0.0
    %354 = vmatpush1.msra.mxu0 0.0
    %355 = vmatprep.subr.mxu0 0.0
    %356 = vmatpush1.msra.mxu0 0.0
    %357 = vmatprep.subr.mxu0 0.0
    %358 = vmatpush1.msra.mxu0 0.0
    %359 = vmatprep.subr.mxu0 0.0
    %360 = vmatpush1.msra.mxu0 0.0
    %361 = vmatprep.subr.mxu0 0.0
    %362 = vmatpush1.msra.mxu0 0.0
    %363 = vmatprep.subr.mxu0 0.0
    %364 = vmatpush1.msra.mxu0 0.0
    %365 = vmatprep.subr.mxu0 0.0
    %366 = vmatpush1.msra.mxu0 0.0
    %367 = vmatprep.subr.mxu0 0.0
    %368 = vmatpush1.msra.mxu0 0.0
    %369 = vmatprep.subr.mxu0 0.0
    %370 = vmatpush1.msra.mxu0 0.0
    %371 = vmatprep.subr.mxu0 0.0
    %372 = vmatpush1.msra.mxu0 0.0
    %373 = vmatprep.mubr.f32.mxu0 %v236
    %374 = vmatmul.mubr.f32.gmra.mrb[0].mxu0 %v152
    %v375 = vpop.f32.mrb[0].mxu0
    %v376 = vadd.f32 0.0, %v375
    %v377 = vpop.f32.mrb[0].mxu0
    %v378 = vadd.f32 0.0, %v377
    %379 = vdwg.mxu0
    %v380 = vmax.f32 %v305, %v307
    %v381 = vmax.f32 %v376, %v378
    %v382 = vmax.f32 %v380, %v381
    %v383 = vld [vmem:[%s4] sm:$0x1]
    %v385 = vlaneseq
    %v386 = vshrl.u32 %v385, 7
    %v387 = vsub.s32 0, %v386
    %v388 = vrot.slane %v383, %v387
    %v390 = vadd.f32 %v382, %v388
    %v391 = vmax.f32 %v390, 0.0
    %v392 = vld [vmem:[%s5] sm:$0xff]
    %v393 = vld [vmem:[%s5 + $0x8] sm:$0xff]
    %v394 = vld [vmem:[%s5 + $0x10] sm:$0xff]
    %v395 = vld [vmem:[%s5 + $0x18] sm:$0xff]
    %v396 = vld [vmem:[%s5 + $0x20] sm:$0xff]
    %v397 = vld [vmem:[%s5 + $0x28] sm:$0xff]
    %v398 = vld [vmem:[%s5 + $0x30] sm:$0xff]
    %v399 = vld [vmem:[%s5 + $0x38] sm:$0xff]
    %v400 = vld [vmem:[%s5 + $0x40] sm:$0xff]
    %v401 = vld [vmem:[%s5 + $0x48] sm:$0xff]
    %v402 = vld [vmem:[%s5 + $0x50] sm:$0xff]
    %v403 = vld [vmem:[%s5 + $0x58] sm:$0xff]
    %v404 = vld [vmem:[%s5 + $0x60] sm:$0xff]
    %v405 = vld [vmem:[%s5 + $0x68] sm:$0xff]
    %v406 = vld [vmem:[%s5 + $0x70] sm:$0xff]
    %v407 = vld [vmem:[%s5 + $0x78] sm:$0xff]
    %v408 = vld [vmem:[%s6] sm:$0x1]
    %v410 = vlaneseq
    %v411 = vshrl.u32 %v410, 7
    %v412 = vsub.s32 0, %v411
    %v413 = vrot.slane %v408, %v412
    %415 = vmatprep.subr.mxu0 0.0
    %416 = vmatpush1.msra.mxu0 %v392
    %417 = vmatprep.subr.mxu0 0.0
    %418 = vmatpush1.msra.mxu0 %v393
    %419 = vmatprep.subr.mxu0 0.0
    %420 = vmatpush1.msra.mxu0 %v394
    %421 = vmatprep.subr.mxu0 0.0
    %422 = vmatpush1.msra.mxu0 %v395
    %423 = vmatprep.subr.mxu0 0.0
    %424 = vmatpush1.msra.mxu0 %v396
    %425 = vmatprep.subr.mxu0 0.0
    %426 = vmatpush1.msra.mxu0 %v397
    %427 = vmatprep.subr.mxu0 0.0
    %428 = vmatpush1.msra.mxu0 %v398
    %429 = vmatprep.subr.mxu0 0.0
    %430 = vmatpush1.msra.mxu0 %v399
    %431 = vmatprep.subr.mxu0 0.0
    %432 = vmatpush1.msra.mxu0 %v400
    %433 = vmatprep.subr.mxu0 0.0
    %434 = vmatpush1.msra.mxu0 %v401
    %435 = vmatprep.subr.mxu0 0.0
    %436 = vmatpush1.msra.mxu0 %v402
    %437 = vmatprep.subr.mxu0 0.0
    %438 = vmatpush1.msra.mxu0 %v403
    %439 = vmatprep.subr.mxu0 0.0
    %440 = vmatpush1.msra.mxu0 %v404
    %441 = vmatprep.subr.mxu0 0.0
    %442 = vmatpush1.msra.mxu0 %v405
    %443 = vmatprep.subr.mxu0 0.0
    %444 = vmatpush1.msra.mxu0 %v406
    %445 = vmatprep.subr.mxu0 0.0
    %446 = vmatpush1.msra.mxu0 %v407
    %447 = vmatprep.subr.mxu0 0.0
    %448 = vmatpush1.msra.mxu0 0.0
    %449 = vmatprep.subr.mxu0 0.0
    %450 = vmatpush1.msra.mxu0 0.0
    %451 = vmatprep.subr.mxu0 0.0
    %452 = vmatpush1.msra.mxu0 0.0
    %453 = vmatprep.subr.mxu0 0.0
    %454 = vmatpush1.msra.mxu0 0.0
    %455 = vmatprep.subr.mxu0 0.0
    %456 = vmatpush1.msra.mxu0 0.0
    %457 = vmatprep.subr.mxu0 0.0
    %458 = vmatpush1.msra.mxu0 0.0
    %459 = vmatprep.subr.mxu0 0.0
    %460 = vmatpush1.msra.mxu0 0.0
    %461 = vmatprep.subr.mxu0 0.0
    %462 = vmatpush1.msra.mxu0 0.0
    %463 = vmatprep.subr.mxu0 0.0
    %464 = vmatpush1.msra.mxu0 0.0
    %465 = vmatprep.subr.mxu0 0.0
    %466 = vmatpush1.msra.mxu0 0.0
    %467 = vmatprep.subr.mxu0 0.0
    %468 = vmatpush1.msra.mxu0 0.0
    %469 = vmatprep.subr.mxu0 0.0
    %470 = vmatpush1.msra.mxu0 0.0
    %471 = vmatprep.subr.mxu0 0.0
    %472 = vmatpush1.msra.mxu0 0.0
    %473 = vmatprep.subr.mxu0 0.0
    %474 = vmatpush1.msra.mxu0 0.0
    %475 = vmatprep.subr.mxu0 0.0
    %476 = vmatpush1.msra.mxu0 0.0
    %477 = vmatprep.subr.mxu0 0.0
    %478 = vmatpush1.msra.mxu0 0.0
    %479 = vmatprep.mubr.f32.mxu0 0.0
    %480 = vmatmul.mubr.f32.gmra.mrb[0].mxu0 %v391
    %v481 = vpop.f32.mrb[0].mxu0
    %v482 = vadd.f32 %v413, %v481
    %v483 = vpop.f32.mrb[0].mxu0
    %484 = vdwg.mxu0
    %v485 = vmax.f32 %v482, 0.0
    %v486 = vld [vmem:[%s7] sm:$0xff]
    %v487 = vld [vmem:[%s7 + $0x8] sm:$0xff]
    %v488 = vld [vmem:[%s7 + $0x10] sm:$0xff]
    %v489 = vld [vmem:[%s7 + $0x18] sm:$0xff]
    %v490 = vld [vmem:[%s7 + $0x20] sm:$0xff]
    %v491 = vld [vmem:[%s7 + $0x28] sm:$0xff]
    %v492 = vld [vmem:[%s7 + $0x30] sm:$0xff]
    %v493 = vld [vmem:[%s7 + $0x38] sm:$0xff]
    %v494 = vld [vmem:[%s7 + $0x40] sm:$0xff]
    %v495 = vld [vmem:[%s7 + $0x48] sm:$0xff]
    %v496 = vld [vmem:[%s7 + $0x50] sm:$0xff]
    %v497 = vld [vmem:[%s7 + $0x58] sm:$0xff]
    %v498 = vld [vmem:[%s7 + $0x60] sm:$0xff]
    %v499 = vld [vmem:[%s7 + $0x68] sm:$0xff]
    %v500 = vld [vmem:[%s7 + $0x70] sm:$0xff]
    %v501 = vld [vmem:[%s7 + $0x78] sm:$0xff]
    %v502 = vld [vmem:[%s7 + $0x80] sm:$0xff]
    %v503 = vld [vmem:[%s7 + $0x88] sm:$0xff]
    %v504 = vld [vmem:[%s7 + $0x90] sm:$0xff]
    %v505 = vld [vmem:[%s7 + $0x98] sm:$0xff]
    %vm506 = vcmask 326656
    %v508 = vsel %vm506, %v485, 0
    %510 = vmatprep.subr.mxu0 %v487
    %511 = vmatpush1.msra.mxu0 %v486
    %512 = vmatprep.subr.mxu0 %v491
    %513 = vmatpush1.msra.mxu0 %v490
    %514 = vmatprep.subr.mxu0 %v495
    %515 = vmatpush1.msra.mxu0 %v494
    %516 = vmatprep.subr.mxu0 %v499
    %517 = vmatpush1.msra.mxu0 %v498
    %518 = vmatprep.subr.mxu0 %v503
    %519 = vmatpush1.msra.mxu0 %v502
    %520 = vmatprep.subr.mxu0 0.0
    %521 = vmatpush1.msra.mxu0 0.0
    %522 = vmatprep.subr.mxu0 0.0
    %523 = vmatpush1.msra.mxu0 0.0
    %524 = vmatprep.subr.mxu0 0.0
    %525 = vmatpush1.msra.mxu0 0.0
    %526 = vmatprep.subr.mxu0 0.0
    %527 = vmatpush1.msra.mxu0 0.0
    %528 = vmatprep.subr.mxu0 0.0
    %529 = vmatpush1.msra.mxu0 0.0
    %530 = vmatprep.subr.mxu0 0.0
    %531 = vmatpush1.msra.mxu0 0.0
    %532 = vmatprep.subr.mxu0 0.0
    %533 = vmatpush1.msra.mxu0 0.0
    %534 = vmatprep.subr.mxu0 0.0
    %535 = vmatpush1.msra.mxu0 0.0
    %536 = vmatprep.subr.mxu0 0.0
    %537 = vmatpush1.msra.mxu0 0.0
    %538 = vmatprep.subr.mxu0 0.0
    %539 = vmatpush1.msra.mxu0 0.0
    %540 = vmatprep.subr.mxu0 0.0
    %541 = vmatpush1.msra.mxu0 0.0
    %542 = vmatprep.subr.mxu0 0.0
    %543 = vmatpush1.msra.mxu0 0.0
    %544 = vmatprep.subr.mxu0 0.0
    %545 = vmatpush1.msra.mxu0 0.0
    %546 = vmatprep.subr.mxu0 0.0
    %547 = vmatpush1.msra.mxu0 0.0
    %548 = vmatprep.subr.mxu0 0.0
    %549 = vmatpush1.msra.mxu0 0.0
    %550 = vmatprep.subr.mxu0 0.0
    %551 = vmatpush1.msra.mxu0 0.0
    %552 = vmatprep.subr.mxu0 0.0
    %553 = vmatpush1.msra.mxu0 0.0
    %554 = vmatprep.subr.mxu0 0.0
    %555 = vmatpush1.msra.mxu0 0.0
    %556 = vmatprep.subr.mxu0 0.0
    %557 = vmatpush1.msra.mxu0 0.0
    %558 = vmatprep.subr.mxu0 0.0
    %559 = vmatpush1.msra.mxu0 0.0
    %560 = vmatprep.subr.mxu0 0.0
    %561 = vmatpush1.msra.mxu0 0.0
    %562 = vmatprep.subr.mxu0 0.0
    %563 = vmatpush1.msra.mxu0 0.0
    %564 = vmatprep.subr.mxu0 0.0
    %565 = vmatpush1.msra.mxu0 0.0
    %566 = vmatprep.subr.mxu0 0.0
    %567 = vmatpush1.msra.mxu0 0.0
    %568 = vmatprep.subr.mxu0 0.0
    %569 = vmatpush1.msra.mxu0 0.0
    %570 = vmatprep.subr.mxu0 0.0
    %571 = vmatpush1.msra.mxu0 0.0
    %572 = vmatprep.subr.mxu0 0.0
    %573 = vmatpush1.msra.mxu0 0.0
    %574 = vmatprep.mubr.f32.mxu0 0.0
    %575 = vmatmul.mubr.f32.gmra.mrb[0].mxu0 %v508
    %v576 = vpop.f32.mrb[0].mxu0
    %v577 = vadd.f32 0.0, %v576
    %v578 = vpop.f32.mrb[0].mxu0
    %v579 = vadd.f32 0.0, %v578
    %580 = vdwg.mxu0
    %581 = vmatprep.subr.mxu0 %v489
    %582 = vmatpush1.msra.mxu0 %v488
    %583 = vmatprep.subr.mxu0 %v493
    %584 = vmatpush1.msra.mxu0 %v492
    %585 = vmatprep.subr.mxu0 %v497
    %586 = vmatpush1.msra.mxu0 %v496
    %587 = vmatprep.subr.mxu0 %v501
    %588 = vmatpush1.msra.mxu0 %v500
    %589 = vmatprep.subr.mxu0 %v505
    %590 = vmatpush1.msra.mxu0 %v504
    %591 = vmatprep.subr.mxu0 0.0
    %592 = vmatpush1.msra.mxu0 0.0
    %593 = vmatprep.subr.mxu0 0.0
    %594 = vmatpush1.msra.mxu0 0.0
    %595 = vmatprep.subr.mxu0 0.0
    %596 = vmatpush1.msra.mxu0 0.0
    %597 = vmatprep.subr.mxu0 0.0
    %598 = vmatpush1.msra.mxu0 0.0
    %599 = vmatprep.subr.mxu0 0.0
    %600 = vmatpush1.msra.mxu0 0.0
    %601 = vmatprep.subr.mxu0 0.0
    %602 = vmatpush1.msra.mxu0 0.0
    %603 = vmatprep.subr.mxu0 0.0
    %604 = vmatpush1.msra.mxu0 0.0
    %605 = vmatprep.subr.mxu0 0.0
    %606 = vmatpush1.msra.mxu0 0.0
    %607 = vmatprep.subr.mxu0 0.0
    %608 = vmatpush1.msra.mxu0 0.0
    %609 = vmatprep.subr.mxu0 0.0
    %610 = vmatpush1.msra.mxu0 0.0
    %611 = vmatprep.subr.mxu0 0.0
    %612 = vmatpush1.msra.mxu0 0.0
    %613 = vmatprep.subr.mxu0 0.0
    %614 = vmatpush1.msra.mxu0 0.0
    %615 = vmatprep.subr.mxu0 0.0
    %616 = vmatpush1.msra.mxu0 0.0
    %617 = vmatprep.subr.mxu0 0.0
    %618 = vmatpush1.msra.mxu0 0.0
    %619 = vmatprep.subr.mxu0 0.0
    %620 = vmatpush1.msra.mxu0 0.0
    %621 = vmatprep.subr.mxu0 0.0
    %622 = vmatpush1.msra.mxu0 0.0
    %623 = vmatprep.subr.mxu0 0.0
    %624 = vmatpush1.msra.mxu0 0.0
    %625 = vmatprep.subr.mxu0 0.0
    %626 = vmatpush1.msra.mxu0 0.0
    %627 = vmatprep.subr.mxu0 0.0
    %628 = vmatpush1.msra.mxu0 0.0
    %629 = vmatprep.subr.mxu0 0.0
    %630 = vmatpush1.msra.mxu0 0.0
    %631 = vmatprep.subr.mxu0 0.0
    %632 = vmatpush1.msra.mxu0 0.0
    %633 = vmatprep.subr.mxu0 0.0
    %634 = vmatpush1.msra.mxu0 0.0
    %635 = vmatprep.subr.mxu0 0.0
    %636 = vmatpush1.msra.mxu0 0.0
    %637 = vmatprep.subr.mxu0 0.0
    %638 = vmatpush1.msra.mxu0 0.0
    %639 = vmatprep.subr.mxu0 0.0
    %640 = vmatpush1.msra.mxu0 0.0
    %641 = vmatprep.subr.mxu0 0.0
    %642 = vmatpush1.msra.mxu0 0.0
    %643 = vmatprep.subr.mxu0 0.0
    %644 = vmatpush1.msra.mxu0 0.0
    %645 = vmatprep.mubr.f32.mxu0 0.0
    %646 = vmatmul.mubr.f32.gmra.mrb[0].mxu0 %v508
    %v647 = vpop.f32.mrb[0].mxu0
    %v648 = vadd.f32 0.0, %v647
    %v649 = vpop.f32.mrb[0].mxu0
    %v650 = vadd.f32 0.0, %v649
    %651 = vdwg.mxu0
    %v652 = vmax.f32 %v577, %v579
    %v653 = vmax.f32 %v648, %v650
    %v654 = vmax.f32 %v652, %v653
    %v655 = vld [vmem:[%s8] sm:$0x1]
    %v657 = vlaneseq
    %v658 = vshrl.u32 %v657, 7
    %v659 = vsub.s32 0, %v658
    %v660 = vrot.slane %v655, %v659
    %v662 = vadd.f32 %v654, %v660
    %v663 = vmax.f32 %v662, 0.0
    %v664 = vld [vmem:[%s9] sm:$0xff]
    %v665 = vld [vmem:[%s9 + $0x8] sm:$0xff]
    %v666 = vld [vmem:[%s9 + $0x10] sm:$0xff]
    %v667 = vld [vmem:[%s9 + $0x18] sm:$0xff]
    %v668 = vld [vmem:[%s9 + $0x20] sm:$0xff]
    %v669 = vld [vmem:[%s9 + $0x28] sm:$0xff]
    %v670 = vld [vmem:[%s9 + $0x30] sm:$0xff]
    %v671 = vld [vmem:[%s9 + $0x38] sm:$0xff]
    %v672 = vld [vmem:[%s9 + $0x40] sm:$0xff]
    %v673 = vld [vmem:[%s9 + $0x48] sm:$0xff]
    %v674 = vld [vmem:[%s9 + $0x50] sm:$0xff]
    %v675 = vld [vmem:[%s9 + $0x58] sm:$0xff]
    %v676 = vld [vmem:[%s9 + $0x60] sm:$0xff]
    %v677 = vld [vmem:[%s9 + $0x68] sm:$0xff]
    %v678 = vld [vmem:[%s9 + $0x70] sm:$0xff]
    %v679 = vld [vmem:[%s9 + $0x78] sm:$0xff]
    %v680 = vld [vmem:[%s10] sm:$0x1]
    %v682 = vlaneseq
    %v683 = vshrl.u32 %v682, 7
    %v684 = vsub.s32 0, %v683
    %v685 = vrot.slane %v680, %v684
    %687 = vmatprep.subr.mxu0 0.0
    %688 = vmatpush1.msra.mxu0 %v664
    %689 = vmatprep.subr.mxu0 0.0
    %690 = vmatpush1.msra.mxu0 %v665
    %691 = vmatprep.subr.mxu0 0.0
    %692 = vmatpush1.msra.mxu0 %v666
    %693 = vmatprep.subr.mxu0 0.0
    %694 = vmatpush1.msra.mxu0 %v667
    %695 = vmatprep.subr.mxu0 0.0
    %696 = vmatpush1.msra.mxu0 %v668
    %697 = vmatprep.subr.mxu0 0.0
    %698 = vmatpush1.msra.mxu0 %v669
    %699 = vmatprep.subr.mxu0 0.0
    %700 = vmatpush1.msra.mxu0 %v670
    %701 = vmatprep.subr.mxu0 0.0
    %702 = vmatpush1.msra.mxu0 %v671
    %703 = vmatprep.subr.mxu0 0.0
    %704 = vmatpush1.msra.mxu0 %v672
    %705 = vmatprep.subr.mxu0 0.0
    %706 = vmatpush1.msra.mxu0 %v673
    %707 = vmatprep.subr.mxu0 0.0
    %708 = vmatpush1.msra.mxu0 %v674
    %709 = vmatprep.subr.mxu0 0.0
    %710 = vmatpush1.msra.mxu0 %v675
    %711 = vmatprep.subr.mxu0 0.0
    %712 = vmatpush1.msra.mxu0 %v676
    %713 = vmatprep.subr.mxu0 0.0
    %714 = vmatpush1.msra.mxu0 %v677
    %715 = vmatprep.subr.mxu0 0.0
    %716 = vmatpush1.msra.mxu0 %v678
    %717 = vmatprep.subr.mxu0 0.0
    %718 = vmatpush1.msra.mxu0 %v679
    %719 = vmatprep.subr.mxu0 0.0
    %720 = vmatpush1.msra.mxu0 0.0
    %721 = vmatprep.subr.mxu0 0.0
    %722 = vmatpush1.msra.mxu0 0.0
    %723 = vmatprep.subr.mxu0 0.0
    %724 = vmatpush1.msra.mxu0 0.0
    %725 = vmatprep.subr.mxu0 0.0
    %726 = vmatpush1.msra.mxu0 0.0
    %727 = vmatprep.subr.mxu0 0.0
    %728 = vmatpush1.msra.mxu0 0.0
    %729 = vmatprep.subr.mxu0 0.0
    %730 = vmatpush1.msra.mxu0 0.0
    %731 = vmatprep.subr.mxu0 0.0
    %732 = vmatpush1.msra.mxu0 0.0
    %733 = vmatprep.subr.mxu0 0.0
    %734 = vmatpush1.msra.mxu0 0.0
    %735 = vmatprep.subr.mxu0 0.0
    %736 = vmatpush1.msra.mxu0 0.0
    %737 = vmatprep.subr.mxu0 0.0
    %738 = vmatpush1.msra.mxu0 0.0
    %739 = vmatprep.subr.mxu0 0.0
    %740 = vmatpush1.msra.mxu0 0.0
    %741 = vmatprep.subr.mxu0 0.0
    %742 = vmatpush1.msra.mxu0 0.0
    %743 = vmatprep.subr.mxu0 0.0
    %744 = vmatpush1.msra.mxu0 0.0
    %745 = vmatprep.subr.mxu0 0.0
    %746 = vmatpush1.msra.mxu0 0.0
    %747 = vmatprep.subr.mxu0 0.0
    %748 = vmatpush1.msra.mxu0 0.0
    %749 = vmatprep.subr.mxu0 0.0
    %750 = vmatpush1.msra.mxu0 0.0
    %751 = vmatprep.mubr.f32.mxu0 0.0
    %752 = vmatmul.mubr.f32.gmra.mrb[0].mxu0 %v663
    %v753 = vpop.f32.mrb[0].mxu0
    %v754 = vadd.f32 %v685, %v753
    %v755 = vpop.f32.mrb[0].mxu0
    %756 = vdwg.mxu0
    %vm757 = vcmask 64512
    %758 = vst.msk [vmem:[%s11] sm:$0xff] %vm757, %v754
    // Predicated region
    $region50: #{dqn_forward_pallas.1} parent=1 // pred_check
      _
    $region51: #{dqn_forward_pallas.1} parent=1 // pred_check_branch
      %760 = sbr.rel (0) target = $region53
    $region52: #{dqn_forward_pallas.1} parent=1 // pred_region
      _
    $region53: #{dqn_forward_pallas.1} parent=1 // pred_fallthru
      _
    // Predicated region
    $region54: #{dqn_forward_pallas.1} parent=1 // pred_check
      _
    $region55: #{dqn_forward_pallas.1} parent=1 // pred_check_branch
      %762 = sbr.rel (0) target = $region57
    $region56: #{dqn_forward_pallas.1} parent=1 // pred_region
      _
    $region57: #{dqn_forward_pallas.1} parent=1 // pred_fallthru
      _
    %763 = vsyncpa [#allocation3], 1

</llo_original>
